<compile_context>
chip_gen: v6e
topology: v6e:2x2x1
jax: 0.10.0
libtpu: 0.0.40
codegen_flags: <defaults>
</compile_context>

<pallas_src>
import functools

import jax
import jax.numpy as jnp
from jax.experimental import pallas as pl
from jax.experimental.pallas import tpu as pltpu

HIDDEN = 300
HIDDEN_PAD = 384          # 3 * 128
LANE = 128


def _round_up(x, m):
    return ((x + m - 1) // m) * m


def _mlp_kernel(x_ref, w1_ref, b1_ref, w2_ref, b2_ref, w3_ref, b3_ref, o_ref):
    # fc1 + ReLU  (bf16 operands -> f32 accumulate -> f32 bias/ReLU on VPU)
    x = x_ref[...].astype(jnp.bfloat16)
    h1 = jnp.dot(x, w1_ref[...], preferred_element_type=jnp.float32) + b1_ref[...]
    h1 = jnp.maximum(h1, 0.0).astype(jnp.bfloat16)
    # fc2 + ReLU
    h2 = jnp.dot(h1, w2_ref[...], preferred_element_type=jnp.float32) + b2_ref[...]
    h2 = jnp.maximum(h2, 0.0).astype(jnp.bfloat16)
    # fc3 (no activation); lane-dense padded output slab
    o_ref[...] = jnp.dot(h2, w3_ref[...], preferred_element_type=jnp.float32) + b3_ref[...]


def cnn_qnetwork_forward(state, params, *, batch_tile=256):
    """state: [B, state_size] float32. params from init_params (padded, bf16 weights)."""
    w1, b1 = params["w1"], params["b1"]
    w2, b2 = params["w2"], params["b2"]
    w3, b3 = params["w3"], params["b3"]
    action_size = params["action_size"]

    B, S = state.shape
    out_pad = w3.shape[1]
    weights = (w1, b1, w2, b2, w3, b3)

    if B >= 2 * batch_tile and B % batch_tile == 0:
        # Large batch: tile rows, shard grid across TensorCores; weights stay
        # resident as full (untiled) VMEM blocks across grid steps.
        tb = batch_tile
        in_specs = [pl.BlockSpec((tb, S), lambda i: (i, 0))] + [
            pl.BlockSpec(a.shape, lambda i: (0, 0)) for a in weights
        ]
        out = pl.pallas_call(
            _mlp_kernel,
            out_shape=jax.ShapeDtypeStruct((B, out_pad), jnp.float32),
            grid=(B // tb,),
            in_specs=in_specs,
            out_specs=pl.BlockSpec((tb, out_pad), lambda i: (i, 0)),
            compiler_params=pltpu.CompilerParams(
                dimension_semantics=("parallel",)),
        )(state, *weights)
    else:
        # Small batch: single invocation, everything as full VMEM blocks.
        vmem = pl.BlockSpec(memory_space=pltpu.MemorySpace.VMEM)
        out = pl.pallas_call(
            _mlp_kernel,
            out_shape=jax.ShapeDtypeStruct((B, out_pad), jnp.float32),
            in_specs=[vmem] * 7,
            out_specs=vmem,
        )(state, *weights)

    return out[:, :action_size]


def init_params(key, state_size, action_size):
    """nn.Linear-style U(-1/sqrt(fan_in), 1/sqrt(fan_in)) init, then zero-pad the
    hidden dim 300->384 and the output dim -> multiple of 128, store weights as
    [in, out] bf16 and biases as [1, out] f32.  Zero padding keeps results exact
    in the first `action_size` output columns (ReLU(0)=0, zero rows/cols)."""
    out_pad = _round_up(max(action_size, 1), LANE)
    ks = jax.random.split(key, 6)

    def linear(kw, kb, fan_in, fan_out, pad_in, pad_out):
        bound = 1.0 / jnp.sqrt(jnp.float32(fan_in))
        w = jax.random.uniform(kw, (fan_in, fan_out), jnp.float32, -bound, bound)
        b = jax.random.uniform(kb, (1, fan_out), jnp.float32, -bound, bound)
        w_pad = jnp.zeros((pad_in, pad_out), jnp.float32).at[:fan_in, :fan_out].set(w)
        b_pad = jnp.zeros((1, pad_out), jnp.float32).at[:, :fan_out].set(b)
        return w_pad.astype(jnp.bfloat16), b_pad

    w1, b1 = linear(ks[0], ks[1], state_size, HIDDEN, state_size, HIDDEN_PAD)
    w2, b2 = linear(ks[2], ks[3], HIDDEN, HIDDEN, HIDDEN_PAD, HIDDEN_PAD)
    w3, b3 = linear(ks[4], ks[5], HIDDEN, action_size, HIDDEN_PAD, out_pad)
    return {"w1": w1, "b1": b1, "w2": w2, "b2": b2, "w3": w3, "b3": b3,
            "action_size": action_size}


def reference_forward(state, params):
    """Pure-JAX reference using the same bf16-operand / f32-accumulate recipe."""
    def layer(x, w, b, relu):
        y = jnp.dot(x.astype(jnp.bfloat16), w,
                    preferred_element_type=jnp.float32) + b
        return jnp.maximum(y, 0.0) if relu else y

    h1 = layer(state, params["w1"], params["b1"], True)
    h2 = layer(h1, params["w2"], params["b2"], True)
    out = layer(h2, params["w3"], params["b3"], False)
    return out[:, :params["action_size"]]


if __name__ == "__main__":
    key = jax.random.PRNGKey(0)
    k_params, k_small, k_large = jax.random.split(key, 3)

    state_size = 16
    action_size = 4
    params = init_params(k_params, state_size, action_size)

    fwd = jax.jit(functools.partial(cnn_qnetwork_forward))

    # Small batch (untiled path).
    batch = 8
    state = jax.random.normal(k_small, (batch, state_size), dtype=jnp.float32)
    out = jax.block_until_ready(cnn_qnetwork_forward(state, params))
    ref = reference_forward(state, params)
    assert out.shape == (batch, action_size), out.shape
    assert jnp.allclose(out, ref, atol=1e-2, rtol=1e-2), "small-batch mismatch"

    # Large batch (tiled, parallel grid path).
    big_batch = 512
    state_big = jax.random.normal(k_large, (big_batch, state_size), dtype=jnp.float32)
    out_big = jax.block_until_ready(cnn_qnetwork_forward(state_big, params))
    ref_big = reference_forward(state_big, params)
    assert out_big.shape == (big_batch, action_size), out_big.shape
    assert jnp.allclose(out_big, ref_big, atol=1e-2, rtol=1e-2), "large-batch mismatch"

    print("KERNEL_OK")
</pallas_src>

<mosaic_0001>
module attributes {stable_mosaic.version = 11 : i64} {
  func.func @_mlp_kernel(%arg0: memref<8x16xf32, #tpu.memory_space<vmem>>, %arg1: memref<16x384xbf16, #tpu.memory_space<vmem>>, %arg2: memref<1x384xf32, #tpu.memory_space<vmem>>, %arg3: memref<384x384xbf16, #tpu.memory_space<vmem>>, %arg4: memref<1x384xf32, #tpu.memory_space<vmem>>, %arg5: memref<384x128xbf16, #tpu.memory_space<vmem>>, %arg6: memref<1x128xf32, #tpu.memory_space<vmem>>, %arg7: memref<8x128xf32, #tpu.memory_space<vmem>>) attributes {dimension_semantics = [], scalar_prefetch = 0 : i64, scratch_operands = 0 : i64, tpu.core_type = #tpu.core_type<tc>} {
    %c0 = arith.constant 0 : index
    %c0_0 = arith.constant 0 : index
    %0 = vector.load %arg0[%c0, %c0_0] : memref<8x16xf32, #tpu.memory_space<vmem>>, vector<8x16xf32>
    %1 = arith.truncf %0 : vector<8x16xf32> to vector<8x16xbf16>
    %c0_1 = arith.constant 0 : index
    %c0_2 = arith.constant 0 : index
    %2 = vector.load %arg1[%c0_1, %c0_2] : memref<16x384xbf16, #tpu.memory_space<vmem>>, vector<16x384xbf16>
    %cst = arith.constant dense<0.000000e+00> : vector<8x384xf32>
    %3 = tpu.matmul %1, %2, %cst {dimension_numbers = #tpu.dot_dimension_numbers<[1], [0], [0], [1], [0, 0, 1, 1], [], []>} : vector<8x16xbf16>, vector<16x384xbf16>, vector<8x384xf32> -> vector<8x384xf32>
    %c0_3 = arith.constant 0 : index
    %c0_4 = arith.constant 0 : index
    %4 = vector.load %arg2[%c0_3, %c0_4] : memref<1x384xf32, #tpu.memory_space<vmem>>, vector<1x384xf32>
    %5 = vector.broadcast %4 : vector<1x384xf32> to vector<8x384xf32>
    %6 = arith.addf %3, %5 : vector<8x384xf32>
    %cst_5 = arith.constant 0.000000e+00 : f32
    %7 = vector.broadcast %cst_5 : f32 to vector<8x384xf32>
    %8 = arith.maximumf %6, %7 : vector<8x384xf32>
    %9 = arith.truncf %8 : vector<8x384xf32> to vector<8x384xbf16>
    %c0_6 = arith.constant 0 : index
    %c0_7 = arith.constant 0 : index
    %10 = vector.load %arg3[%c0_6, %c0_7] : memref<384x384xbf16, #tpu.memory_space<vmem>>, vector<384x384xbf16>
    %cst_8 = arith.constant dense<0.000000e+00> : vector<8x384xf32>
    %11 = tpu.matmul %9, %10, %cst_8 {dimension_numbers = #tpu.dot_dimension_numbers<[1], [0], [0], [1], [0, 0, 1, 1], [], []>} : vector<8x384xbf16>, vector<384x384xbf16>, vector<8x384xf32> -> vector<8x384xf32>
    %c0_9 = arith.constant 0 : index
    %c0_10 = arith.constant 0 : index
    %12 = vector.load %arg4[%c0_9, %c0_10] : memref<1x384xf32, #tpu.memory_space<vmem>>, vector<1x384xf32>
    %13 = vector.broadcast %12 : vector<1x384xf32> to vector<8x384xf32>
    %14 = arith.addf %11, %13 : vector<8x384xf32>
    %cst_11 = arith.constant 0.000000e+00 : f32
    %15 = vector.broadcast %cst_11 : f32 to vector<8x384xf32>
    %16 = arith.maximumf %14, %15 : vector<8x384xf32>
    %17 = arith.truncf %16 : vector<8x384xf32> to vector<8x384xbf16>
    %c0_12 = arith.constant 0 : index
    %c0_13 = arith.constant 0 : index
    %18 = vector.load %arg5[%c0_12, %c0_13] : memref<384x128xbf16, #tpu.memory_space<vmem>>, vector<384x128xbf16>
    %cst_14 = arith.constant dense<0.000000e+00> : vector<8x128xf32>
    %19 = tpu.matmul %17, %18, %cst_14 {dimension_numbers = #tpu.dot_dimension_numbers<[1], [0], [0], [1], [0, 0, 1, 1], [], []>} : vector<8x384xbf16>, vector<384x128xbf16>, vector<8x128xf32> -> vector<8x128xf32>
    %c0_15 = arith.constant 0 : index
    %c0_16 = arith.constant 0 : index
    %20 = vector.load %arg6[%c0_15, %c0_16] : memref<1x128xf32, #tpu.memory_space<vmem>>, vector<1x128xf32>
    %21 = vector.broadcast %20 : vector<1x128xf32> to vector<8x128xf32>
    %22 = arith.addf %19, %21 : vector<8x128xf32>
    %c0_17 = arith.constant 0 : index
    %c0_18 = arith.constant 0 : index
    %23 = vector.load %arg7[%c0_17, %c0_18] : memref<8x128xf32, #tpu.memory_space<vmem>>, vector<8x128xf32>
    tpu.vector_store %arg7[%c0_17, %c0_18], %22 {strides = array<i32>} : memref<8x128xf32, #tpu.memory_space<vmem>>, vector<8x128xf32>,
    return
  }
}

</mosaic_0001>

<llo_original>
// kernel: tpu_custom_call.1
$region0: #{tpu_custom_call.1}
  #allocation0 [shape = 'u32[]', space=smem, size = 0x4, offset = 0x4, fixed_abs, tag = 'smem constant byte address 0x4 - core index']
  #allocation1 [shape = 'u32[144,128]{1,0:T(1,128)}', space=vmem, size = 0x12000, scoped, tag = 'internal scratch']
  %s0 = inlined_call_operand.hbm [shape: f32[8,16], index: 0, kind: input, shape index: {}]
  %s1 = inlined_call_operand.hbm [shape: bf16[16,384], index: 1, kind: input, shape index: {}]
  %s2 = inlined_call_operand.vmem [shape: f32[1,384], index: 2, kind: input, shape index: {}]
  %s3 = inlined_call_operand.hbm [shape: bf16[384,384], index: 3, kind: input, shape index: {}]
  %s4 = inlined_call_operand.vmem [shape: f32[1,384], index: 4, kind: input, shape index: {}]
  %s5 = inlined_call_operand.hbm [shape: bf16[384,128], index: 5, kind: input, shape index: {}]
  %s6 = inlined_call_operand.vmem [shape: f32[1,128], index: 6, kind: input, shape index: {}]
  %s7 = inlined_call_operand.hbm [shape: f32[8,128], index: 7, kind: output, shape index: {}]
  %s8 = sld [smem:[#allocation0]]
  $region54: #{tpu_custom_call.1} parent=0
    _
  %s10 = ssub.s32 1, %s8
  %s11 = scalar_select 0, %s10, %s8
  $region1: #{tpu_custom_call.1} parent=0
    #allocation2 [shape = 'u8[4096]{0}', space=vmem, size = 0x1000, scoped, tag = 'input window, operand 0, single buffered']
    #allocation3 [shape = 's32[1]{0}', space=sflag, size = 0x4, scoped, tag = 'scoped memory for tpu_custom_call.1']
    #allocation4 [shape = 's32[1]{0}', space=sflag, size = 0x4, scoped, tag = 'scoped memory for tpu_custom_call.1']
    #allocation5 [shape = 'u8[12288]{0}', space=vmem, size = 0x3000, scoped, tag = 'input window, operand 1, single buffered']
    #allocation6 [shape = 's32[1]{0}', space=sflag, size = 0x4, scoped, tag = 'scoped memory for tpu_custom_call.1']
    #allocation7 [shape = 'u8[294912]{0}', space=vmem, size = 0x48000, scoped, tag = 'input window, operand 3, single buffered']
    #allocation8 [shape = 'u8[98304]{0}', space=vmem, size = 0x18000, scoped, tag = 'input window, operand 5, single buffered']
    #allocation9 [shape = 's32[1]{0}', space=sflag, size = 0x4, scoped, tag = 'scoped memory for tpu_custom_call.1']
    #allocation10 [shape = 'u8[4096]{0}', space=vmem, size = 0x1000, scoped, tag = 'output window, operand 0, single buffered']
    %12 = vsyncpa [#allocation3], 0
    %13 = vsyncpa [#allocation6], 0
    %14 = vsyncpa [#allocation9], 0
    %15 = vsyncpa [#allocation4], 0
    // Predicated region
    $region2: #{tpu_custom_call.1} parent=1 // pred_check
      _
    $region3: #{tpu_custom_call.1} parent=1 // pred_check_branch
      %17 = sbr.rel (0) target = $region5
    $region4: #{tpu_custom_call.1} parent=1 // pred_region
      %s19 = ssub.s32 128, 128
      %20 = vsyncadd [#allocation3], %s19
      %s22 = sshll.u32 [#allocation2], 4
      %s23 = int_to_ptr.vmem [resolvable:$true] %s22
      %25 = dma.hbm_to_vmem [thread:$0]  %s0, 128, %s23, [#allocation3]
    $region5: #{tpu_custom_call.1} parent=1 // pred_fallthru
      _
    // Predicated region
    $region6: #{tpu_custom_call.1} parent=1 // pred_check
      _
    $region7: #{tpu_custom_call.1} parent=1 // pred_check_branch
      %27 = sbr.rel (0) target = $region9
    $region8: #{tpu_custom_call.1} parent=1 // pred_region
      %s29 = ssub.s32 384, 384
      %30 = vsyncadd [#allocation6], %s29
      %s31 = sshll.u32 [#allocation5], 4
      %s32 = int_to_ptr.vmem [resolvable:$true] %s31
      %37 = dma.hbm_to_vmem [thread:$0]  %s1, 384, %s32, [#allocation6], 192, 192, 12
    $region9: #{tpu_custom_call.1} parent=1 // pred_fallthru
      _
    // Predicated region
    $region10: #{tpu_custom_call.1} parent=1 // pred_check
      _
    $region11: #{tpu_custom_call.1} parent=1 // pred_check_branch
      %39 = sbr.rel (0) target = $region13
    $region12: #{tpu_custom_call.1} parent=1 // pred_region
      _
    $region13: #{tpu_custom_call.1} parent=1 // pred_fallthru
      _
    // Predicated region
    $region14: #{tpu_custom_call.1} parent=1 // pred_check
      _
    $region15: #{tpu_custom_call.1} parent=1 // pred_check_branch
      %41 = sbr.rel (0) target = $region17
    $region16: #{tpu_custom_call.1} parent=1 // pred_region
      %s43 = ssub.s32 9216, 9216
      %44 = vsyncadd [#allocation6], %s43
      %s45 = sshll.u32 [#allocation7], 4
      %s46 = int_to_ptr.vmem [resolvable:$true] %s45
      %51 = dma.hbm_to_vmem [thread:$0]  %s3, 9216, %s46, [#allocation6], 192, 192, 12
    $region17: #{tpu_custom_call.1} parent=1 // pred_fallthru
      _
    // Predicated region
    $region18: #{tpu_custom_call.1} parent=1 // pred_check
      _
    $region19: #{tpu_custom_call.1} parent=1 // pred_check_branch
      %53 = sbr.rel (0) target = $region21
    $region20: #{tpu_custom_call.1} parent=1 // pred_region
      _
    $region21: #{tpu_custom_call.1} parent=1 // pred_fallthru
      _
    // Predicated region
    $region22: #{tpu_custom_call.1} parent=1 // pred_check
      _
    $region23: #{tpu_custom_call.1} parent=1 // pred_check_branch
      %55 = sbr.rel (0) target = $region25
    $region24: #{tpu_custom_call.1} parent=1 // pred_region
      %s57 = ssub.s32 3072, 3072
      %58 = vsyncadd [#allocation9], %s57
      %s59 = sshll.u32 [#allocation8], 4
      %s60 = int_to_ptr.vmem [resolvable:$true] %s59
      %65 = dma.hbm_to_vmem [thread:$0]  %s5, 3072, %s60, [#allocation9], 64, 64, 4
    $region25: #{tpu_custom_call.1} parent=1 // pred_fallthru
      _
    // Predicated region
    $region26: #{tpu_custom_call.1} parent=1 // pred_check
      _
    $region27: #{tpu_custom_call.1} parent=1 // pred_check_branch
      %67 = sbr.rel (0) target = $region29
    $region28: #{tpu_custom_call.1} parent=1 // pred_region
      _
    $region29: #{tpu_custom_call.1} parent=1 // pred_fallthru
      _
    // Predicated region
    $region30: #{tpu_custom_call.1} parent=1 // pred_check
      _
    $region31: #{tpu_custom_call.1} parent=1 // pred_check_branch
      %69 = sbr.rel (0) target = $region33
    $region32: #{tpu_custom_call.1} parent=1 // pred_region
      %70 = dma.done [#allocation3], 128
    $region33: #{tpu_custom_call.1} parent=1 // pred_fallthru
      _
    // Predicated region
    $region34: #{tpu_custom_call.1} parent=1 // pred_check
      _
    $region35: #{tpu_custom_call.1} parent=1 // pred_check_branch
      %72 = sbr.rel (0) target = $region37
    $region36: #{tpu_custom_call.1} parent=1 // pred_region
      %73 = dma.done [#allocation6], 384
    $region37: #{tpu_custom_call.1} parent=1 // pred_fallthru
      _
    // Predicated region
    $region38: #{tpu_custom_call.1} parent=1 // pred_check
      _
    $region39: #{tpu_custom_call.1} parent=1 // pred_check_branch
      %75 = sbr.rel (0) target = $region41
    $region40: #{tpu_custom_call.1} parent=1 // pred_region
      %76 = dma.done [#allocation6], 9216
    $region41: #{tpu_custom_call.1} parent=1 // pred_fallthru
      _
    // Predicated region
    $region42: #{tpu_custom_call.1} parent=1 // pred_check
      _
    $region43: #{tpu_custom_call.1} parent=1 // pred_check_branch
      %78 = sbr.rel (0) target = $region45
    $region44: #{tpu_custom_call.1} parent=1 // pred_region
      %79 = dma.done [#allocation9], 3072
    $region45: #{tpu_custom_call.1} parent=1 // pred_fallthru
      _
    %v81 = vld [vmem:[#allocation2] sm:$0xff]
    %v82 = vpack.c.bf16 %v81, %v81
    %v83 = vld [vmem:[#allocation5] sm:$0xff]
    %v84 = vld [vmem:[#allocation5 + $0x8] sm:$0xf]
    %v85 = vld [vmem:[#allocation5 + $0xc] sm:$0xff]
    %v86 = vld [vmem:[#allocation5 + $0x14] sm:$0xf]
    %v87 = vld [vmem:[%s2] sm:$0x7]
    %v89 = vlaneseq
    %v90 = vshrl.u32 %v89, 7
    %v91 = vsub.s32 0, %v90
    %v92 = vrot.slane %v87, %v91
    %v93 = vlaneseq
    %v94 = vshrl.u32 %v93, 7
    %v95 = vsub.s32 1, %v94
    %v96 = vrot.slane %v87, %v95
    %v97 = vlaneseq
    %v98 = vshrl.u32 %v97, 7
    %v99 = vsub.s32 2, %v98
    %v100 = vrot.slane %v87, %v99
    %v108 = vunpack.c.l.b16 %v83
    %v109 = vunpack.c.h.b16 %v83
    %v110 = vunpack.c.l.b16 %v84
    %v111 = vunpack.c.l.b16 %v85
    %v112 = vunpack.c.h.b16 %v85
    %v113 = vunpack.c.l.b16 %v86
    %v114 = vpack.c.b16 %v111, %v108
    %v115 = vpack.c.b16 %v112, %v109
    %v116 = vpack.c.b16 %v113, %v110
    %vm120 = vcmask 130048
    %v122 = vsel %vm120, %v82, 0
    %124 = vmatprep.subr.bf16.mxu0 0
    %125 = vmatpush1.bf16.msra.mxu0 0
    %126 = vmatprep.subr.bf16.mxu0 0
    %127 = vmatpush1.bf16.msra.mxu0 0
    %128 = vmatprep.subr.bf16.mxu0 0
    %129 = vmatpush1.bf16.msra.mxu0 0
    %130 = vmatprep.subr.bf16.mxu0 0
    %131 = vmatpush1.bf16.msra.mxu0 0
    %132 = vmatprep.subr.bf16.mxu0 0
    %133 = vmatpush1.bf16.msra.mxu0 0
    %134 = vmatprep.subr.bf16.mxu0 0
    %135 = vmatpush1.bf16.msra.mxu0 0
    %136 = vmatprep.subr.bf16.mxu0 0
    %137 = vmatpush1.bf16.msra.mxu0 0
    %138 = vmatprep.subr.bf16.mxu0 %v115
    %139 = vmatpush1.bf16.msra.mxu0 %v114
    %140 = vmatprep.subr.bf16.mxu0 0
    %141 = vmatpush2.bf16.msra.mxu0 0
    %142 = vmatprep.subr.bf16.mxu0 0
    %143 = vmatpush2.bf16.msra.mxu0 0
    %144 = vmatprep.subr.bf16.mxu0 0
    %145 = vmatpush2.bf16.msra.mxu0 0
    %146 = vmatprep.subr.bf16.mxu0 0
    %147 = vmatpush2.bf16.msra.mxu0 0
    %148 = vmatprep.subr.bf16.mxu0 0
    %149 = vmatpush2.bf16.msra.mxu0 0
    %150 = vmatprep.subr.bf16.mxu0 0
    %151 = vmatpush2.bf16.msra.mxu0 0
    %152 = vmatprep.subr.bf16.mxu0 0
    %153 = vmatpush2.bf16.msra.mxu0 0
    %154 = vmatprep.subr.bf16.mxu0 0
    %155 = vmatpush2.bf16.msra.mxu0 0
    %156 = vmatprep.mubr.bf16.mxu0 0
    %157 = vmatmul.mubr.bf16.gmra.mxu0 %v122
    %v158 = vpop.f32.mrf.mxu0
    %v159 = vadd.f32 %v92, %v158
    %v160 = vpop.f32.mrf.mxu0
    %v161 = vadd.f32 %v96, %v160
    %v162 = vpop.f32.mrf.mxu0
    %v163 = vpop.f32.mrf.mxu0
    %164 = vdwg.mxu0
    %165 = vmatprep.subr.bf16.mxu0 0
    %166 = vmatpush1.bf16.msra.mxu0 0
    %167 = vmatprep.subr.bf16.mxu0 0
    %168 = vmatpush1.bf16.msra.mxu0 0
    %169 = vmatprep.subr.bf16.mxu0 0
    %170 = vmatpush1.bf16.msra.mxu0 0
    %171 = vmatprep.subr.bf16.mxu0 0
    %172 = vmatpush1.bf16.msra.mxu0 0
    %173 = vmatprep.subr.bf16.mxu0 0
    %174 = vmatpush1.bf16.msra.mxu0 0
    %175 = vmatprep.subr.bf16.mxu0 0
    %176 = vmatpush1.bf16.msra.mxu0 0
    %177 = vmatprep.subr.bf16.mxu0 0
    %178 = vmatpush1.bf16.msra.mxu0 0
    %179 = vmatprep.subr.bf16.mxu0 0
    %180 = vmatpush1.bf16.msra.mxu0 %v116
    %181 = vmatprep.subr.bf16.mxu0 0
    %182 = vmatpush2.bf16.msra.mxu0 0
    %183 = vmatprep.subr.bf16.mxu0 0
    %184 = vmatpush2.bf16.msra.mxu0 0
    %185 = vmatprep.subr.bf16.mxu0 0
    %186 = vmatpush2.bf16.msra.mxu0 0
    %187 = vmatprep.subr.bf16.mxu0 0
    %188 = vmatpush2.bf16.msra.mxu0 0
    %189 = vmatprep.subr.bf16.mxu0 0
    %190 = vmatpush2.bf16.msra.mxu0 0
    %191 = vmatprep.subr.bf16.mxu0 0
    %192 = vmatpush2.bf16.msra.mxu0 0
    %193 = vmatprep.subr.bf16.mxu0 0
    %194 = vmatpush2.bf16.msra.mxu0 0
    %195 = vmatprep.subr.bf16.mxu0 0
    %196 = vmatpush2.bf16.msra.mxu0 0
    %197 = vmatprep.mubr.bf16.mxu0 0
    %198 = vmatmul.mubr.bf16.gmra.mxu0 %v122
    %v199 = vpop.f32.mrf.mxu0
    %v200 = vadd.f32 %v100, %v199
    %v201 = vpop.f32.mrf.mxu0
    %v202 = vpop.f32.mrf.mxu0
    %v203 = vpop.f32.mrf.mxu0
    %204 = vdwg.mxu0
    %v205 = vmax.f32 %v159, 0.0
    %v206 = vmax.f32 %v161, 0.0
    %v207 = vmax.f32 %v200, 0.0
    %v208 = vpack.c.bf16 %v205, %v205
    %v209 = vpack.c.bf16 %v206, %v206
    %v210 = vpack.c.bf16 %v207, %v207
    %v211 = vld [vmem:[#allocation7] sm:$0xff]
    %v212 = vld [vmem:[#allocation7 + $0x8] sm:$0xf]
    %v213 = vld [vmem:[#allocation7 + $0xc] sm:$0xff]
    %v214 = vld [vmem:[#allocation7 + $0x14] sm:$0xf]
    %v215 = vld [vmem:[#allocation7 + $0x18] sm:$0xff]
    %v216 = vld [vmem:[#allocation7 + $0x20] sm:$0xf]
    %v217 = vld [vmem:[#allocation7 + $0x24] sm:$0xff]
    %v218 = vld [vmem:[#allocation7 + $0x2c] sm:$0xf]
    %v219 = vld [vmem:[#allocation7 + $0x30] sm:$0xff]
    %v220 = vld [vmem:[#allocation7 + $0x38] sm:$0xf]
    %v221 = vld [vmem:[#allocation7 + $0x3c] sm:$0xff]
    %v222 = vld [vmem:[#allocation7 + $0x44] sm:$0xf]
    %v223 = vld [vmem:[#allocation7 + $0x48] sm:$0xff]
    %v224 = vld [vmem:[#allocation7 + $0x50] sm:$0xf]
    %v225 = vld [vmem:[#allocation7 + $0x54] sm:$0xff]
    %v226 = vld [vmem:[#allocation7 + $0x5c] sm:$0xf]
    %v227 = vld [vmem:[#allocation7 + $0x60] sm:$0xff]
    %v228 = vld [vmem:[#allocation7 + $0x68] sm:$0xf]
    %v229 = vld [vmem:[#allocation7 + $0x6c] sm:$0xff]
    %v230 = vld [vmem:[#allocation7 + $0x74] sm:$0xf]
    %v231 = vld [vmem:[#allocation7 + $0x78] sm:$0xff]
    %v232 = vld [vmem:[#allocation7 + $0x80] sm:$0xf]
    %v233 = vld [vmem:[#allocation7 + $0x84] sm:$0xff]
    %v234 = vld [vmem:[#allocation7 + $0x8c] sm:$0xf]
    %v235 = vld [vmem:[#allocation7 + $0x90] sm:$0xff]
    %v236 = vld [vmem:[#allocation7 + $0x98] sm:$0xf]
    %v237 = vld [vmem:[#allocation7 + $0x9c] sm:$0xff]
    %v238 = vld [vmem:[#allocation7 + $0xa4] sm:$0xf]
    %v239 = vld [vmem:[#allocation7 + $0xa8] sm:$0xff]
    %v240 = vld [vmem:[#allocation7 + $0xb0] sm:$0xf]
    %v241 = vld [vmem:[#allocation7 + $0xb4] sm:$0xff]
    %v242 = vld [vmem:[#allocation7 + $0xbc] sm:$0xf]
    %v243 = vld [vmem:[#allocation7 + $0xc0] sm:$0xff]
    %v244 = vld [vmem:[#allocation7 + $0xc8] sm:$0xf]
    %v245 = vld [vmem:[#allocation7 + $0xcc] sm:$0xff]
    %v246 = vld [vmem:[#allocation7 + $0xd4] sm:$0xf]
    %v247 = vld [vmem:[#allocation7 + $0xd8] sm:$0xff]
    %v248 = vld [vmem:[#allocation7 + $0xe0] sm:$0xf]
    %v249 = vld [vmem:[#allocation7 + $0xe4] sm:$0xff]
    %v250 = vld [vmem:[#allocation7 + $0xec] sm:$0xf]
    %v251 = vld [vmem:[#allocation7 + $0xf0] sm:$0xff]
    %v252 = vld [vmem:[#allocation7 + $0xf8] sm:$0xf]
    %v253 = vld [vmem:[#allocation7 + $0xfc] sm:$0xff]
    %v254 = vld [vmem:[#allocation7 + $0x104] sm:$0xf]
    %v255 = vld [vmem:[#allocation7 + $0x108] sm:$0xff]
    %v256 = vld [vmem:[#allocation7 + $0x110] sm:$0xf]
    %v257 = vld [vmem:[#allocation7 + $0x114] sm:$0xff]
    %v258 = vld [vmem:[#allocation7 + $0x11c] sm:$0xf]
    %v259 = vld [vmem:[#allocation7 + $0x120] sm:$0xff]
    %v260 = vld [vmem:[#allocation7 + $0x128] sm:$0xf]
    %v261 = vld [vmem:[#allocation7 + $0x12c] sm:$0xff]
    %v262 = vld [vmem:[#allocation7 + $0x134] sm:$0xf]
    %v263 = vld [vmem:[#allocation7 + $0x138] sm:$0xff]
    %v264 = vld [vmem:[#allocation7 + $0x140] sm:$0xf]
    %v265 = vld [vmem:[#allocation7 + $0x144] sm:$0xff]
    %v266 = vld [vmem:[#allocation7 + $0x14c] sm:$0xf]
    %v267 = vld [vmem:[#allocation7 + $0x150] sm:$0xff]
    %v268 = vld [vmem:[#allocation7 + $0x158] sm:$0xf]
    %v269 = vld [vmem:[#allocation7 + $0x15c] sm:$0xff]
    %v270 = vld [vmem:[#allocation7 + $0x164] sm:$0xf]
    %v271 = vld [vmem:[#allocation7 + $0x168] sm:$0xff]
    %v272 = vld [vmem:[#allocation7 + $0x170] sm:$0xf]
    %v273 = vld [vmem:[#allocation7 + $0x174] sm:$0xff]
    %v274 = vld [vmem:[#allocation7 + $0x17c] sm:$0xf]
    %v275 = vld [vmem:[#allocation7 + $0x180] sm:$0xff]
    %v276 = vld [vmem:[#allocation7 + $0x188] sm:$0xf]
    %v277 = vld [vmem:[#allocation7 + $0x18c] sm:$0xff]
    %v278 = vld [vmem:[#allocation7 + $0x194] sm:$0xf]
    %v279 = vld [vmem:[#allocation7 + $0x198] sm:$0xff]
    %v280 = vld [vmem:[#allocation7 + $0x1a0] sm:$0xf]
    %v281 = vld [vmem:[#allocation7 + $0x1a4] sm:$0xff]
    %v282 = vld [vmem:[#allocation7 + $0x1ac] sm:$0xf]
    %v283 = vld [vmem:[#allocation7 + $0x1b0] sm:$0xff]
    %v284 = vld [vmem:[#allocation7 + $0x1b8] sm:$0xf]
    %v285 = vld [vmem:[#allocation7 + $0x1bc] sm:$0xff]
    %v286 = vld [vmem:[#allocation7 + $0x1c4] sm:$0xf]
    %v287 = vld [vmem:[#allocation7 + $0x1c8] sm:$0xff]
    %v288 = vld [vmem:[#allocation7 + $0x1d0] sm:$0xf]
    %v289 = vld [vmem:[#allocation7 + $0x1d4] sm:$0xff]
    %v290 = vld [vmem:[#allocation7 + $0x1dc] sm:$0xf]
    %v291 = vld [vmem:[#allocation7 + $0x1e0] sm:$0xff]
    %v292 = vld [vmem:[#allocation7 + $0x1e8] sm:$0xf]
    %v293 = vld [vmem:[#allocation7 + $0x1ec] sm:$0xff]
    %v294 = vld [vmem:[#allocation7 + $0x1f4] sm:$0xf]
    %v295 = vld [vmem:[#allocation7 + $0x1f8] sm:$0xff]
    %v296 = vld [vmem:[#allocation7 + $0x200] sm:$0xf]
    %v297 = vld [vmem:[#allocation7 + $0x204] sm:$0xff]
    %v298 = vld [vmem:[#allocation7 + $0x20c] sm:$0xf]
    %v299 = vld [vmem:[#allocation7 + $0x210] sm:$0xff]
    %v300 = vld [vmem:[#allocation7 + $0x218] sm:$0xf]
    %v301 = vld [vmem:[#allocation7 + $0x21c] sm:$0xff]
    %v302 = vld [vmem:[#allocation7 + $0x224] sm:$0xf]
    %v303 = vld [vmem:[#allocation7 + $0x228] sm:$0xff]
    %v304 = vld [vmem:[#allocation7 + $0x230] sm:$0xf]
    %v305 = vld [vmem:[#allocation7 + $0x234] sm:$0xff]
    %v306 = vld [vmem:[#allocation7 + $0x23c] sm:$0xf]
    %v307 = vld [vmem:[%s4] sm:$0x7]
    %v309 = vlaneseq
    %v310 = vshrl.u32 %v309, 7
    %v311 = vsub.s32 0, %v310
    %v312 = vrot.slane %v307, %v311
    %v313 = vlaneseq
    %v314 = vshrl.u32 %v313, 7
    %v315 = vsub.s32 1, %v314
    %v316 = vrot.slane %v307, %v315
    %v317 = vlaneseq
    %v318 = vshrl.u32 %v317, 7
    %v319 = vsub.s32 2, %v318
    %v320 = vrot.slane %v307, %v319
    %v420 = vunpack.c.l.b16 %v211
    %v421 = vunpack.c.h.b16 %v211
    %v422 = vunpack.c.l.b16 %v212
    %v423 = vunpack.c.l.b16 %v213
    %v424 = vunpack.c.h.b16 %v213
    %v425 = vunpack.c.l.b16 %v214
    %v426 = vunpack.c.l.b16 %v215
    %v427 = vunpack.c.h.b16 %v215
    %v428 = vunpack.c.l.b16 %v216
    %v429 = vunpack.c.l.b16 %v217
    %v430 = vunpack.c.h.b16 %v217
    %v431 = vunpack.c.l.b16 %v218
    %v432 = vunpack.c.l.b16 %v219
    %v433 = vunpack.c.h.b16 %v219
    %v434 = vunpack.c.l.b16 %v220
    %v435 = vunpack.c.l.b16 %v221
    %v436 = vunpack.c.h.b16 %v221
    %v437 = vunpack.c.l.b16 %v222
    %v438 = vunpack.c.l.b16 %v223
    %v439 = vunpack.c.h.b16 %v223
    %v440 = vunpack.c.l.b16 %v224
    %v441 = vunpack.c.l.b16 %v225
    %v442 = vunpack.c.h.b16 %v225
    %v443 = vunpack.c.l.b16 %v226
    %v444 = vunpack.c.l.b16 %v227
    %v445 = vunpack.c.h.b16 %v227
    %v446 = vunpack.c.l.b16 %v228
    %v447 = vunpack.c.l.b16 %v229
    %v448 = vunpack.c.h.b16 %v229
    %v449 = vunpack.c.l.b16 %v230
    %v450 = vunpack.c.l.b16 %v231
    %v451 = vunpack.c.h.b16 %v231
    %v452 = vunpack.c.l.b16 %v232
    %v453 = vunpack.c.l.b16 %v233
    %v454 = vunpack.c.h.b16 %v233
    %v455 = vunpack.c.l.b16 %v234
    %v456 = vunpack.c.l.b16 %v235
    %v457 = vunpack.c.h.b16 %v235
    %v458 = vunpack.c.l.b16 %v236
    %v459 = vunpack.c.l.b16 %v237
    %v460 = vunpack.c.h.b16 %v237
    %v461 = vunpack.c.l.b16 %v238
    %v462 = vunpack.c.l.b16 %v239
    %v463 = vunpack.c.h.b16 %v239
    %v464 = vunpack.c.l.b16 %v240
    %v465 = vunpack.c.l.b16 %v241
    %v466 = vunpack.c.h.b16 %v241
    %v467 = vunpack.c.l.b16 %v242
    %v468 = vunpack.c.l.b16 %v243
    %v469 = vunpack.c.h.b16 %v243
    %v470 = vunpack.c.l.b16 %v244
    %v471 = vunpack.c.l.b16 %v245
    %v472 = vunpack.c.h.b16 %v245
    %v473 = vunpack.c.l.b16 %v246
    %v474 = vunpack.c.l.b16 %v247
    %v475 = vunpack.c.h.b16 %v247
    %v476 = vunpack.c.l.b16 %v248
    %v477 = vunpack.c.l.b16 %v249
    %v478 = vunpack.c.h.b16 %v249
    %v479 = vunpack.c.l.b16 %v250
    %v480 = vunpack.c.l.b16 %v251
    %v481 = vunpack.c.h.b16 %v251
    %v482 = vunpack.c.l.b16 %v252
    %v483 = vunpack.c.l.b16 %v253
    %v484 = vunpack.c.h.b16 %v253
    %v485 = vunpack.c.l.b16 %v254
    %v486 = vunpack.c.l.b16 %v255
    %v487 = vunpack.c.h.b16 %v255
    %v488 = vunpack.c.l.b16 %v256
    %v489 = vunpack.c.l.b16 %v257
    %v490 = vunpack.c.h.b16 %v257
    %v491 = vunpack.c.l.b16 %v258
    %v492 = vunpack.c.l.b16 %v259
    %v493 = vunpack.c.h.b16 %v259
    %v494 = vunpack.c.l.b16 %v260
    %v495 = vunpack.c.l.b16 %v261
    %v496 = vunpack.c.h.b16 %v261
    %v497 = vunpack.c.l.b16 %v262
    %v498 = vunpack.c.l.b16 %v263
    %v499 = vunpack.c.h.b16 %v263
    %v500 = vunpack.c.l.b16 %v264
    %v501 = vunpack.c.l.b16 %v265
    %v502 = vunpack.c.h.b16 %v265
    %v503 = vunpack.c.l.b16 %v266
    %v504 = vunpack.c.l.b16 %v267
    %v505 = vunpack.c.h.b16 %v267
    %v506 = vunpack.c.l.b16 %v268
    %v507 = vunpack.c.l.b16 %v269
    %v508 = vunpack.c.h.b16 %v269
    %v509 = vunpack.c.l.b16 %v270
    %v510 = vunpack.c.l.b16 %v271
    %v511 = vunpack.c.h.b16 %v271
    %v512 = vunpack.c.l.b16 %v272
    %v513 = vunpack.c.l.b16 %v273
    %v514 = vunpack.c.h.b16 %v273
    %v515 = vunpack.c.l.b16 %v274
    %v516 = vunpack.c.l.b16 %v275
    %v517 = vunpack.c.h.b16 %v275
    %v518 = vunpack.c.l.b16 %v276
    %v519 = vunpack.c.l.b16 %v277
    %v520 = vunpack.c.h.b16 %v277
    %v521 = vunpack.c.l.b16 %v278
    %v522 = vunpack.c.l.b16 %v279
    %v523 = vunpack.c.h.b16 %v279
    %v524 = vunpack.c.l.b16 %v280
    %v525 = vunpack.c.l.b16 %v281
    %v526 = vunpack.c.h.b16 %v281
    %v527 = vunpack.c.l.b16 %v282
    %v528 = vunpack.c.l.b16 %v283
    %v529 = vunpack.c.h.b16 %v283
    %v530 = vunpack.c.l.b16 %v284
    %v531 = vunpack.c.l.b16 %v285
    %v532 = vunpack.c.h.b16 %v285
    %v533 = vunpack.c.l.b16 %v286
    %v534 = vunpack.c.l.b16 %v287
    %v535 = vunpack.c.h.b16 %v287
    %v536 = vunpack.c.l.b16 %v288
    %v537 = vunpack.c.l.b16 %v289
    %v538 = vunpack.c.h.b16 %v289
    %v539 = vunpack.c.l.b16 %v290
    %v540 = vunpack.c.l.b16 %v291
    %v541 = vunpack.c.h.b16 %v291
    %v542 = vunpack.c.l.b16 %v292
    %v543 = vunpack.c.l.b16 %v293
    %v544 = vunpack.c.h.b16 %v293
    %v545 = vunpack.c.l.b16 %v294
    %v546 = vunpack.c.l.b16 %v295
    %v547 = vunpack.c.h.b16 %v295
    %v548 = vunpack.c.l.b16 %v296
    %v549 = vunpack.c.l.b16 %v297
    %v550 = vunpack.c.h.b16 %v297
    %v551 = vunpack.c.l.b16 %v298
    %v552 = vunpack.c.l.b16 %v299
    %v553 = vunpack.c.h.b16 %v299
    %v554 = vunpack.c.l.b16 %v300
    %v555 = vunpack.c.l.b16 %v301
    %v556 = vunpack.c.h.b16 %v301
    %v557 = vunpack.c.l.b16 %v302
    %v558 = vunpack.c.l.b16 %v303
    %v559 = vunpack.c.h.b16 %v303
    %v560 = vunpack.c.l.b16 %v304
    %v561 = vunpack.c.l.b16 %v305
    %v562 = vunpack.c.h.b16 %v305
    %v563 = vunpack.c.l.b16 %v306
    %v564 = vpack.c.b16 %v423, %v420
    %v565 = vpack.c.b16 %v424, %v421
    %v566 = vpack.c.b16 %v425, %v422
    %v567 = vpack.c.b16 %v429, %v426
    %v568 = vpack.c.b16 %v430, %v427
    %v569 = vpack.c.b16 %v431, %v428
    %v570 = vpack.c.b16 %v435, %v432
    %v571 = vpack.c.b16 %v436, %v433
    %v572 = vpack.c.b16 %v437, %v434
    %v573 = vpack.c.b16 %v441, %v438
    %v574 = vpack.c.b16 %v442, %v439
    %v575 = vpack.c.b16 %v443, %v440
    %v576 = vpack.c.b16 %v447, %v444
    %v577 = vpack.c.b16 %v448, %v445
    %v578 = vpack.c.b16 %v449, %v446
    %v579 = vpack.c.b16 %v453, %v450
    %v580 = vpack.c.b16 %v454, %v451
    %v581 = vpack.c.b16 %v455, %v452
    %v582 = vpack.c.b16 %v459, %v456
    %v583 = vpack.c.b16 %v460, %v457
    %v584 = vpack.c.b16 %v461, %v458
    %v585 = vpack.c.b16 %v465, %v462
    %v586 = vpack.c.b16 %v466, %v463
    %v587 = vpack.c.b16 %v467, %v464
    %v588 = vpack.c.b16 %v471, %v468
    %v589 = vpack.c.b16 %v472, %v469
    %v590 = vpack.c.b16 %v473, %v470
    %v591 = vpack.c.b16 %v477, %v474
    %v592 = vpack.c.b16 %v478, %v475
    %v593 = vpack.c.b16 %v479, %v476
    %v594 = vpack.c.b16 %v483, %v480
    %v595 = vpack.c.b16 %v484, %v481
    %v596 = vpack.c.b16 %v485, %v482
    %v597 = vpack.c.b16 %v489, %v486
    %v598 = vpack.c.b16 %v490, %v487
    %v599 = vpack.c.b16 %v491, %v488
    %v600 = vpack.c.b16 %v495, %v492
    %v601 = vpack.c.b16 %v496, %v493
    %v602 = vpack.c.b16 %v497, %v494
    %v603 = vpack.c.b16 %v501, %v498
    %v604 = vpack.c.b16 %v502, %v499
    %v605 = vpack.c.b16 %v503, %v500
    %v606 = vpack.c.b16 %v507, %v504
    %v607 = vpack.c.b16 %v508, %v505
    %v608 = vpack.c.b16 %v509, %v506
    %v609 = vpack.c.b16 %v513, %v510
    %v610 = vpack.c.b16 %v514, %v511
    %v611 = vpack.c.b16 %v515, %v512
    %v612 = vpack.c.b16 %v519, %v516
    %v613 = vpack.c.b16 %v520, %v517
    %v614 = vpack.c.b16 %v521, %v518
    %v615 = vpack.c.b16 %v525, %v522
    %v616 = vpack.c.b16 %v526, %v523
    %v617 = vpack.c.b16 %v527, %v524
    %v618 = vpack.c.b16 %v531, %v528
    %v619 = vpack.c.b16 %v532, %v529
    %v620 = vpack.c.b16 %v533, %v530
    %v621 = vpack.c.b16 %v537, %v534
    %v622 = vpack.c.b16 %v538, %v535
    %v623 = vpack.c.b16 %v539, %v536
    %v624 = vpack.c.b16 %v543, %v540
    %v625 = vpack.c.b16 %v544, %v541
    %v626 = vpack.c.b16 %v545, %v542
    %v627 = vpack.c.b16 %v549, %v546
    %v628 = vpack.c.b16 %v550, %v547
    %v629 = vpack.c.b16 %v551, %v548
    %v630 = vpack.c.b16 %v555, %v552
    %v631 = vpack.c.b16 %v556, %v553
    %v632 = vpack.c.b16 %v557, %v554
    %v633 = vpack.c.b16 %v561, %v558
    %v634 = vpack.c.b16 %v562, %v559
    %v635 = vpack.c.b16 %v563, %v560
    %708 = vmatprep.subr.bf16.mxu0 %v586
    %709 = vmatpush1.bf16.msra.mxu0 %v585
    %710 = vmatprep.subr.bf16.mxu0 %v583
    %711 = vmatpush1.bf16.msra.mxu0 %v582
    %712 = vmatprep.subr.bf16.mxu0 %v580
    %713 = vmatpush1.bf16.msra.mxu0 %v579
    %714 = vmatprep.subr.bf16.mxu0 %v577
    %715 = vmatpush1.bf16.msra.mxu0 %v576
    %716 = vmatprep.subr.bf16.mxu0 %v574
    %717 = vmatpush1.bf16.msra.mxu0 %v573
    %718 = vmatprep.subr.bf16.mxu0 %v571
    %719 = vmatpush1.bf16.msra.mxu0 %v570
    %720 = vmatprep.subr.bf16.mxu0 %v568
    %721 = vmatpush1.bf16.msra.mxu0 %v567
    %722 = vmatprep.subr.bf16.mxu0 %v565
    %723 = vmatpush1.bf16.msra.mxu0 %v564
    %724 = vmatprep.subr.bf16.mxu0 %v610
    %725 = vmatpush2.bf16.msra.mxu0 %v609
    %726 = vmatprep.subr.bf16.mxu0 %v607
    %727 = vmatpush2.bf16.msra.mxu0 %v606
    %728 = vmatprep.subr.bf16.mxu0 %v604
    %729 = vmatpush2.bf16.msra.mxu0 %v603
    %730 = vmatprep.subr.bf16.mxu0 %v601
    %731 = vmatpush2.bf16.msra.mxu0 %v600
    %732 = vmatprep.subr.bf16.mxu0 %v598
    %733 = vmatpush2.bf16.msra.mxu0 %v597
    %734 = vmatprep.subr.bf16.mxu0 %v595
    %735 = vmatpush2.bf16.msra.mxu0 %v594
    %736 = vmatprep.subr.bf16.mxu0 %v592
    %737 = vmatpush2.bf16.msra.mxu0 %v591
    %738 = vmatprep.subr.bf16.mxu0 %v589
    %739 = vmatpush2.bf16.msra.mxu0 %v588
    %740 = vmatprep.mubr.bf16.mxu0 %v209
    %741 = vmatmul.mubr.bf16.gmra.mxu0 %v208
    %v742 = vpop.f32.mrf.mxu0
    %v743 = vadd.f32 %v312, %v742
    %v744 = vpop.f32.mrf.mxu0
    %v745 = vadd.f32 %v316, %v744
    %v746 = vpop.f32.mrf.mxu0
    %v747 = vpop.f32.mrf.mxu0
    %748 = vdwg.mxu0
    %749 = vmatprep.subr.bf16.mxu0 %v634
    %750 = vmatpush1.bf16.msra.mxu0 %v633
    %751 = vmatprep.subr.bf16.mxu0 %v631
    %752 = vmatpush1.bf16.msra.mxu0 %v630
    %753 = vmatprep.subr.bf16.mxu0 %v628
    %754 = vmatpush1.bf16.msra.mxu0 %v627
    %755 = vmatprep.subr.bf16.mxu0 %v625
    %756 = vmatpush1.bf16.msra.mxu0 %v624
    %757 = vmatprep.subr.bf16.mxu0 %v622
    %758 = vmatpush1.bf16.msra.mxu0 %v621
    %759 = vmatprep.subr.bf16.mxu0 %v619
    %760 = vmatpush1.bf16.msra.mxu0 %v618
    %761 = vmatprep.subr.bf16.mxu0 %v616
    %762 = vmatpush1.bf16.msra.mxu0 %v615
    %763 = vmatprep.subr.bf16.mxu0 %v613
    %764 = vmatpush1.bf16.msra.mxu0 %v612
    %765 = vmatprep.subr.bf16.mxu0 0
    %766 = vmatpush2.bf16.msra.mxu0 0
    %767 = vmatprep.subr.bf16.mxu0 0
    %768 = vmatpush2.bf16.msra.mxu0 0
    %769 = vmatprep.subr.bf16.mxu0 0
    %770 = vmatpush2.bf16.msra.mxu0 0
    %771 = vmatprep.subr.bf16.mxu0 0
    %772 = vmatpush2.bf16.msra.mxu0 0
    %773 = vmatprep.subr.bf16.mxu0 0
    %774 = vmatpush2.bf16.msra.mxu0 0
    %775 = vmatprep.subr.bf16.mxu0 0
    %776 = vmatpush2.bf16.msra.mxu0 0
    %777 = vmatprep.subr.bf16.mxu0 0
    %778 = vmatpush2.bf16.msra.mxu0 0
    %779 = vmatprep.subr.bf16.mxu0 0
    %780 = vmatpush2.bf16.msra.mxu0 0
    %781 = vmatprep.mubr.bf16.mxu0 0
    %782 = vmatmul.mubr.bf16.gmra.mxu0 %v210
    %v783 = vpop.f32.mrf.mxu0
    %v784 = vadd.f32 %v743, %v783
    %v785 = vpop.f32.mrf.mxu0
    %v786 = vadd.f32 %v745, %v785
    %v787 = vpop.f32.mrf.mxu0
    %v788 = vpop.f32.mrf.mxu0
    %789 = vdwg.mxu0
    %790 = vmatprep.subr.bf16.mxu0 0
    %791 = vmatpush1.bf16.msra.mxu0 %v587
    %792 = vmatprep.subr.bf16.mxu0 0
    %793 = vmatpush1.bf16.msra.mxu0 %v584
    %794 = vmatprep.subr.bf16.mxu0 0
    %795 = vmatpush1.bf16.msra.mxu0 %v581
    %796 = vmatprep.subr.bf16.mxu0 0
    %797 = vmatpush1.bf16.msra.mxu0 %v578
    %798 = vmatprep.subr.bf16.mxu0 0
    %799 = vmatpush1.bf16.msra.mxu0 %v575
    %800 = vmatprep.subr.bf16.mxu0 0
    %801 = vmatpush1.bf16.msra.mxu0 %v572
    %802 = vmatprep.subr.bf16.mxu0 0
    %803 = vmatpush1.bf16.msra.mxu0 %v569
    %804 = vmatprep.subr.bf16.mxu0 0
    %805 = vmatpush1.bf16.msra.mxu0 %v566
    %806 = vmatprep.subr.bf16.mxu0 0
    %807 = vmatpush2.bf16.msra.mxu0 %v611
    %808 = vmatprep.subr.bf16.mxu0 0
    %809 = vmatpush2.bf16.msra.mxu0 %v608
    %810 = vmatprep.subr.bf16.mxu0 0
    %811 = vmatpush2.bf16.msra.mxu0 %v605
    %812 = vmatprep.subr.bf16.mxu0 0
    %813 = vmatpush2.bf16.msra.mxu0 %v602
    %814 = vmatprep.subr.bf16.mxu0 0
    %815 = vmatpush2.bf16.msra.mxu0 %v599
    %816 = vmatprep.subr.bf16.mxu0 0
    %817 = vmatpush2.bf16.msra.mxu0 %v596
    %818 = vmatprep.subr.bf16.mxu0 0
    %819 = vmatpush2.bf16.msra.mxu0 %v593
    %820 = vmatprep.subr.bf16.mxu0 0
    %821 = vmatpush2.bf16.msra.mxu0 %v590
    %822 = vmatprep.mubr.bf16.mxu0 %v209
    %823 = vmatmul.mubr.bf16.gmra.mxu0 %v208
    %v824 = vpop.f32.mrf.mxu0
    %v825 = vadd.f32 %v320, %v824
    %v826 = vpop.f32.mrf.mxu0
    %v827 = vpop.f32.mrf.mxu0
    %v828 = vpop.f32.mrf.mxu0
    %829 = vdwg.mxu0
    %830 = vmatprep.subr.bf16.mxu0 0
    %831 = vmatpush1.bf16.msra.mxu0 %v635
    %832 = vmatprep.subr.bf16.mxu0 0
    %833 = vmatpush1.bf16.msra.mxu0 %v632
    %834 = vmatprep.subr.bf16.mxu0 0
    %835 = vmatpush1.bf16.msra.mxu0 %v629
    %836 = vmatprep.subr.bf16.mxu0 0
    %837 = vmatpush1.bf16.msra.mxu0 %v626
    %838 = vmatprep.subr.bf16.mxu0 0
    %839 = vmatpush1.bf16.msra.mxu0 %v623
    %840 = vmatprep.subr.bf16.mxu0 0
    %841 = vmatpush1.bf16.msra.mxu0 %v620
    %842 = vmatprep.subr.bf16.mxu0 0
    %843 = vmatpush1.bf16.msra.mxu0 %v617
    %844 = vmatprep.subr.bf16.mxu0 0
    %845 = vmatpush1.bf16.msra.mxu0 %v614
    %846 = vmatprep.subr.bf16.mxu0 0
    %847 = vmatpush2.bf16.msra.mxu0 0
    %848 = vmatprep.subr.bf16.mxu0 0
    %849 = vmatpush2.bf16.msra.mxu0 0
    %850 = vmatprep.subr.bf16.mxu0 0
    %851 = vmatpush2.bf16.msra.mxu0 0
    %852 = vmatprep.subr.bf16.mxu0 0
    %853 = vmatpush2.bf16.msra.mxu0 0
    %854 = vmatprep.subr.bf16.mxu0 0
    %855 = vmatpush2.bf16.msra.mxu0 0
    %856 = vmatprep.subr.bf16.mxu0 0
    %857 = vmatpush2.bf16.msra.mxu0 0
    %858 = vmatprep.subr.bf16.mxu0 0
    %859 = vmatpush2.bf16.msra.mxu0 0
    %860 = vmatprep.subr.bf16.mxu0 0
    %861 = vmatpush2.bf16.msra.mxu0 0
    %862 = vmatprep.mubr.bf16.mxu0 0
    %863 = vmatmul.mubr.bf16.gmra.mxu0 %v210
    %v864 = vpop.f32.mrf.mxu0
    %v865 = vadd.f32 %v825, %v864
    %v866 = vpop.f32.mrf.mxu0
    %v867 = vpop.f32.mrf.mxu0
    %v868 = vpop.f32.mrf.mxu0
    %869 = vdwg.mxu0
    %v870 = vmax.f32 %v784, 0.0
    %v871 = vmax.f32 %v786, 0.0
    %v872 = vmax.f32 %v865, 0.0
    %v873 = vpack.c.bf16 %v870, %v870
    %v874 = vpack.c.bf16 %v871, %v871
    %v875 = vpack.c.bf16 %v872, %v872
    %v876 = vld [vmem:[#allocation8] sm:$0xf]
    %v877 = vld [vmem:[#allocation8 + $0x4] sm:$0xf]
    %v878 = vld [vmem:[#allocation8 + $0x8] sm:$0xf]
    %v879 = vld [vmem:[#allocation8 + $0xc] sm:$0xf]
    %v880 = vld [vmem:[#allocation8 + $0x10] sm:$0xf]
    %v881 = vld [vmem:[#allocation8 + $0x14] sm:$0xf]
    %v882 = vld [vmem:[#allocation8 + $0x18] sm:$0xf]
    %v883 = vld [vmem:[#allocation8 + $0x1c] sm:$0xf]
    %v884 = vld [vmem:[#allocation8 + $0x20] sm:$0xf]
    %v885 = vld [vmem:[#allocation8 + $0x24] sm:$0xf]
    %v886 = vld [vmem:[#allocation8 + $0x28] sm:$0xf]
    %v887 = vld [vmem:[#allocation8 + $0x2c] sm:$0xf]
    %v888 = vld [vmem:[#allocation8 + $0x30] sm:$0xf]
    %v889 = vld [vmem:[#allocation8 + $0x34] sm:$0xf]
    %v890 = vld [vmem:[#allocation8 + $0x38] sm:$0xf]
    %v891 = vld [vmem:[#allocation8 + $0x3c] sm:$0xf]
    %v892 = vld [vmem:[#allocation8 + $0x40] sm:$0xf]
    %v893 = vld [vmem:[#allocation8 + $0x44] sm:$0xf]
    %v894 = vld [vmem:[#allocation8 + $0x48] sm:$0xf]
    %v895 = vld [vmem:[#allocation8 + $0x4c] sm:$0xf]
    %v896 = vld [vmem:[#allocation8 + $0x50] sm:$0xf]
    %v897 = vld [vmem:[#allocation8 + $0x54] sm:$0xf]
    %v898 = vld [vmem:[#allocation8 + $0x58] sm:$0xf]
    %v899 = vld [vmem:[#allocation8 + $0x5c] sm:$0xf]
    %v900 = vld [vmem:[#allocation8 + $0x60] sm:$0xf]
    %v901 = vld [vmem:[#allocation8 + $0x64] sm:$0xf]
    %v902 = vld [vmem:[#allocation8 + $0x68] sm:$0xf]
    %v903 = vld [vmem:[#allocation8 + $0x6c] sm:$0xf]
    %v904 = vld [vmem:[#allocation8 + $0x70] sm:$0xf]
    %v905 = vld [vmem:[#allocation8 + $0x74] sm:$0xf]
    %v906 = vld [vmem:[#allocation8 + $0x78] sm:$0xf]
    %v907 = vld [vmem:[#allocation8 + $0x7c] sm:$0xf]
    %v908 = vld [vmem:[#allocation8 + $0x80] sm:$0xf]
    %v909 = vld [vmem:[#allocation8 + $0x84] sm:$0xf]
    %v910 = vld [vmem:[#allocation8 + $0x88] sm:$0xf]
    %v911 = vld [vmem:[#allocation8 + $0x8c] sm:$0xf]
    %v912 = vld [vmem:[#allocation8 + $0x90] sm:$0xf]
    %v913 = vld [vmem:[#allocation8 + $0x94] sm:$0xf]
    %v914 = vld [vmem:[#allocation8 + $0x98] sm:$0xf]
    %v915 = vld [vmem:[#allocation8 + $0x9c] sm:$0xf]
    %v916 = vld [vmem:[#allocation8 + $0xa0] sm:$0xf]
    %v917 = vld [vmem:[#allocation8 + $0xa4] sm:$0xf]
    %v918 = vld [vmem:[#allocation8 + $0xa8] sm:$0xf]
    %v919 = vld [vmem:[#allocation8 + $0xac] sm:$0xf]
    %v920 = vld [vmem:[#allocation8 + $0xb0] sm:$0xf]
    %v921 = vld [vmem:[#allocation8 + $0xb4] sm:$0xf]
    %v922 = vld [vmem:[#allocation8 + $0xb8] sm:$0xf]
    %v923 = vld [vmem:[#allocation8 + $0xbc] sm:$0xf]
    %v924 = vld [vmem:[%s6] sm:$0x1]
    %v926 = vlaneseq
    %v927 = vshrl.u32 %v926, 7
    %v928 = vsub.s32 0, %v927
    %v929 = vrot.slane %v924, %v928
    %v979 = vunpack.c.l.b16 %v876
    %v980 = vunpack.c.l.b16 %v877
    %v981 = vunpack.c.l.b16 %v878
    %v982 = vunpack.c.l.b16 %v879
    %v983 = vunpack.c.l.b16 %v880
    %v984 = vunpack.c.l.b16 %v881
    %v985 = vunpack.c.l.b16 %v882
    %v986 = vunpack.c.l.b16 %v883
    %v987 = vunpack.c.l.b16 %v884
    %v988 = vunpack.c.l.b16 %v885
    %v989 = vunpack.c.l.b16 %v886
    %v990 = vunpack.c.l.b16 %v887
    %v991 = vunpack.c.l.b16 %v888
    %v992 = vunpack.c.l.b16 %v889
    %v993 = vunpack.c.l.b16 %v890
    %v994 = vunpack.c.l.b16 %v891
    %v995 = vunpack.c.l.b16 %v892
    %v996 = vunpack.c.l.b16 %v893
    %v997 = vunpack.c.l.b16 %v894
    %v998 = vunpack.c.l.b16 %v895
    %v999 = vunpack.c.l.b16 %v896
    %v1000 = vunpack.c.l.b16 %v897
    %v1001 = vunpack.c.l.b16 %v898
    %v1002 = vunpack.c.l.b16 %v899
    %v1003 = vunpack.c.l.b16 %v900
    %v1004 = vunpack.c.l.b16 %v901
    %v1005 = vunpack.c.l.b16 %v902
    %v1006 = vunpack.c.l.b16 %v903
    %v1007 = vunpack.c.l.b16 %v904
    %v1008 = vunpack.c.l.b16 %v905
    %v1009 = vunpack.c.l.b16 %v906
    %v1010 = vunpack.c.l.b16 %v907
    %v1011 = vunpack.c.l.b16 %v908
    %v1012 = vunpack.c.l.b16 %v909
    %v1013 = vunpack.c.l.b16 %v910
    %v1014 = vunpack.c.l.b16 %v911
    %v1015 = vunpack.c.l.b16 %v912
    %v1016 = vunpack.c.l.b16 %v913
    %v1017 = vunpack.c.l.b16 %v914
    %v1018 = vunpack.c.l.b16 %v915
    %v1019 = vunpack.c.l.b16 %v916
    %v1020 = vunpack.c.l.b16 %v917
    %v1021 = vunpack.c.l.b16 %v918
    %v1022 = vunpack.c.l.b16 %v919
    %v1023 = vunpack.c.l.b16 %v920
    %v1024 = vunpack.c.l.b16 %v921
    %v1025 = vunpack.c.l.b16 %v922
    %v1026 = vunpack.c.l.b16 %v923
    %v1027 = vpack.c.b16 %v980, %v979
    %v1028 = vpack.c.b16 %v982, %v981
    %v1029 = vpack.c.b16 %v984, %v983
    %v1030 = vpack.c.b16 %v986, %v985
    %v1031 = vpack.c.b16 %v988, %v987
    %v1032 = vpack.c.b16 %v990, %v989
    %v1033 = vpack.c.b16 %v992, %v991
    %v1034 = vpack.c.b16 %v994, %v993
    %v1035 = vpack.c.b16 %v996, %v995
    %v1036 = vpack.c.b16 %v998, %v997
    %v1037 = vpack.c.b16 %v1000, %v999
    %v1038 = vpack.c.b16 %v1002, %v1001
    %v1039 = vpack.c.b16 %v1004, %v1003
    %v1040 = vpack.c.b16 %v1006, %v1005
    %v1041 = vpack.c.b16 %v1008, %v1007
    %v1042 = vpack.c.b16 %v1010, %v1009
    %v1043 = vpack.c.b16 %v1012, %v1011
    %v1044 = vpack.c.b16 %v1014, %v1013
    %v1045 = vpack.c.b16 %v1016, %v1015
    %v1046 = vpack.c.b16 %v1018, %v1017
    %v1047 = vpack.c.b16 %v1020, %v1019
    %v1048 = vpack.c.b16 %v1022, %v1021
    %v1049 = vpack.c.b16 %v1024, %v1023
    %v1050 = vpack.c.b16 %v1026, %v1025
    %1075 = vmatprep.subr.bf16.mxu0 0
    %1076 = vmatpush1.bf16.msra.mxu0 %v1034
    %1077 = vmatprep.subr.bf16.mxu0 0
    %1078 = vmatpush1.bf16.msra.mxu0 %v1033
    %1079 = vmatprep.subr.bf16.mxu0 0
    %1080 = vmatpush1.bf16.msra.mxu0 %v1032
    %1081 = vmatprep.subr.bf16.mxu0 0
    %1082 = vmatpush1.bf16.msra.mxu0 %v1031
    %1083 = vmatprep.subr.bf16.mxu0 0
    %1084 = vmatpush1.bf16.msra.mxu0 %v1030
    %1085 = vmatprep.subr.bf16.mxu0 0
    %1086 = vmatpush1.bf16.msra.mxu0 %v1029
    %1087 = vmatprep.subr.bf16.mxu0 0
    %1088 = vmatpush1.bf16.msra.mxu0 %v1028
    %1089 = vmatprep.subr.bf16.mxu0 0
    %1090 = vmatpush1.bf16.msra.mxu0 %v1027
    %1091 = vmatprep.subr.bf16.mxu0 0
    %1092 = vmatpush2.bf16.msra.mxu0 %v1042
    %1093 = vmatprep.subr.bf16.mxu0 0
    %1094 = vmatpush2.bf16.msra.mxu0 %v1041
    %1095 = vmatprep.subr.bf16.mxu0 0
    %1096 = vmatpush2.bf16.msra.mxu0 %v1040
    %1097 = vmatprep.subr.bf16.mxu0 0
    %1098 = vmatpush2.bf16.msra.mxu0 %v1039
    %1099 = vmatprep.subr.bf16.mxu0 0
    %1100 = vmatpush2.bf16.msra.mxu0 %v1038
    %1101 = vmatprep.subr.bf16.mxu0 0
    %1102 = vmatpush2.bf16.msra.mxu0 %v1037
    %1103 = vmatprep.subr.bf16.mxu0 0
    %1104 = vmatpush2.bf16.msra.mxu0 %v1036
    %1105 = vmatprep.subr.bf16.mxu0 0
    %1106 = vmatpush2.bf16.msra.mxu0 %v1035
    %1107 = vmatprep.mubr.bf16.mxu0 %v874
    %1108 = vmatmul.mubr.bf16.gmra.mxu0 %v873
    %v1109 = vpop.f32.mrf.mxu0
    %v1110 = vadd.f32 %v929, %v1109
    %v1111 = vpop.f32.mrf.mxu0
    %v1112 = vpop.f32.mrf.mxu0
    %v1113 = vpop.f32.mrf.mxu0
    %1114 = vdwg.mxu0
    %1115 = vmatprep.subr.bf16.mxu0 0
    %1116 = vmatpush1.bf16.msra.mxu0 %v1050
    %1117 = vmatprep.subr.bf16.mxu0 0
    %1118 = vmatpush1.bf16.msra.mxu0 %v1049
    %1119 = vmatprep.subr.bf16.mxu0 0
    %1120 = vmatpush1.bf16.msra.mxu0 %v1048
    %1121 = vmatprep.subr.bf16.mxu0 0
    %1122 = vmatpush1.bf16.msra.mxu0 %v1047
    %1123 = vmatprep.subr.bf16.mxu0 0
    %1124 = vmatpush1.bf16.msra.mxu0 %v1046
    %1125 = vmatprep.subr.bf16.mxu0 0
    %1126 = vmatpush1.bf16.msra.mxu0 %v1045
    %1127 = vmatprep.subr.bf16.mxu0 0
    %1128 = vmatpush1.bf16.msra.mxu0 %v1044
    %1129 = vmatprep.subr.bf16.mxu0 0
    %1130 = vmatpush1.bf16.msra.mxu0 %v1043
    %1131 = vmatprep.subr.bf16.mxu0 0
    %1132 = vmatpush2.bf16.msra.mxu0 0
    %1133 = vmatprep.subr.bf16.mxu0 0
    %1134 = vmatpush2.bf16.msra.mxu0 0
    %1135 = vmatprep.subr.bf16.mxu0 0
    %1136 = vmatpush2.bf16.msra.mxu0 0
    %1137 = vmatprep.subr.bf16.mxu0 0
    %1138 = vmatpush2.bf16.msra.mxu0 0
    %1139 = vmatprep.subr.bf16.mxu0 0
    %1140 = vmatpush2.bf16.msra.mxu0 0
    %1141 = vmatprep.subr.bf16.mxu0 0
    %1142 = vmatpush2.bf16.msra.mxu0 0
    %1143 = vmatprep.subr.bf16.mxu0 0
    %1144 = vmatpush2.bf16.msra.mxu0 0
    %1145 = vmatprep.subr.bf16.mxu0 0
    %1146 = vmatpush2.bf16.msra.mxu0 0
    %1147 = vmatprep.mubr.bf16.mxu0 0
    %1148 = vmatmul.mubr.bf16.gmra.mxu0 %v875
    %v1149 = vpop.f32.mrf.mxu0
    %v1150 = vadd.f32 %v1110, %v1149
    %v1151 = vpop.f32.mrf.mxu0
    %v1152 = vpop.f32.mrf.mxu0
    %v1153 = vpop.f32.mrf.mxu0
    %1154 = vdwg.mxu0
    %1155 = vst [vmem:[#allocation10] sm:$0xff] %v1150
    // Predicated region
    $region46: #{tpu_custom_call.1} parent=1 // pred_check
      _
    $region47: #{tpu_custom_call.1} parent=1 // pred_check_branch
      %1157 = sbr.rel (0) target = $region49
    $region48: #{tpu_custom_call.1} parent=1 // pred_region
      %s1159 = ssub.s32 128, 128
      %1160 = vsyncadd [#allocation4], %s1159
      %s1162 = sshll.u32 [#allocation10], 4
      %s1163 = int_to_ptr.vmem [resolvable:$true] %s1162
      %1165 = dma.vmem_to_hbm [thread:$0]  %s1163, 128, %s7, [#allocation4]
    $region49: #{tpu_custom_call.1} parent=1 // pred_fallthru
      _
    // Predicated region
    $region50: #{tpu_custom_call.1} parent=1 // pred_check
      _
    $region51: #{tpu_custom_call.1} parent=1 // pred_check_branch
      %1167 = sbr.rel (0) target = $region53
    $region52: #{tpu_custom_call.1} parent=1 // pred_region
      %1168 = dma.done [#allocation4], 128
    $region53: #{tpu_custom_call.1} parent=1 // pred_fallthru
      _
    %1169 = vsyncpa [#allocation3], 1
    %1170 = vsyncpa [#allocation6], 1
    %1171 = vsyncpa [#allocation9], 1
    %1172 = vsyncpa [#allocation4], 1

</llo_original>
